<compile_context>
chip_gen: v5e
topology: v5e:2x2
jax: 0.10.0
libtpu: 0.0.40
codegen_flags: <defaults>
</compile_context>

<pallas_src>
import functools

import jax
import jax.numpy as jnp
from jax.experimental import pallas as pl
from jax.experimental.pallas import tpu as pltpu

CUKA1 = 1.540598
CUKA2 = 1.544426
KA1_MULT = 0.5771816010184
DEFAULT_LAMBDA_SIZE = 16  # nn.Parameter size in the module; unused by forward()


def _delta_twoth(lambda_, twoth, ka1):
    # 2 * rad2deg(arcsin(lambda * sin(deg2rad(0.5*twoth)) / ka1)) - twoth
    return (
        2.0 * jnp.rad2deg(jnp.arcsin(lambda_ * jnp.sin(jnp.deg2rad(0.5 * twoth)) / ka1))
        - twoth
    )


def _doublet_interp_row(y0, x_mesh, ka1, ka2):
    """torch semantics: _torch_interp(doublet_mesh, x_mesh, y0).  O(N) wrapper work."""
    xp = jnp.asarray(x_mesh, jnp.float32)
    y0 = jnp.asarray(y0, jnp.float32)
    n = xp.shape[0]
    delta_ka2 = _delta_twoth(jnp.float32(ka2), xp, jnp.float32(ka1))
    doublet = xp * xp / (xp + delta_ka2)
    # torch.searchsorted(right=False) == jnp.searchsorted(side='left')
    idxs = jnp.clip(jnp.searchsorted(xp, doublet, side="left") - 1, 0, n - 2)
    slopes = (y0[1:] - y0[:-1]) / (xp[1:] - xp[:-1])
    return y0[idxs] + slopes[idxs] * (doublet - xp[idxs])


def _lambda_conv_kernel(dbl_ref, y_ref, o_ref, *, ka1_mult):
    # Hot path: pure VPU blend.  dbl_ref is the (1, N) doublet row already
    # scaled by (1 - ka1_mult); broadcasting (1, N) -> (tb, N) is a sublane
    # broadcast, so this is one vmul + one vadd per vreg.
    o_ref[...] = y_ref[...] * ka1_mult + dbl_ref[...]


def lambda_conv_forward(
    y, x_mesh, ka1=CUKA1, ka2=CUKA2, ka1_mult=KA1_MULT, block_rows=512
):
    y = jnp.asarray(y, jnp.float32)
    b, n = y.shape

    # (1, N) doublet contribution, pre-scaled so the kernel is a pure blend.
    dbl = _doublet_interp_row(y[0], x_mesh, ka1, ka2) * (1.0 - float(ka1_mult))
    dbl = dbl.reshape(1, n).astype(jnp.float32)

    # Row tile: multiple of 8, large by default (kernel is HBM-bandwidth bound),
    # capped so double-buffered (in + out) tiles stay under ~24 MiB of VMEM.
    tb = max(8, min(int(block_rows), ((b + 7) // 8) * 8))
    max_tb = max(8, (((24 << 20) // (4 * n * 4)) // 8) * 8)
    tb = max(8, (min(tb, max_tb) // 8) * 8)

    # Ragged last block handled by Pallas (OOB writes discarded) -> no pad copy.
    grid = (pl.cdiv(b, tb),)

    vmem_need = 2 * 2 * tb * n * 4 + 2 * n * 4  # double-buffered y/out tiles + dbl
    vmem_limit = int(min(max(2 * vmem_need, 32 << 20), 64 << 20))

    kernel = functools.partial(_lambda_conv_kernel, ka1_mult=float(ka1_mult))

    out = pl.pallas_call(
        kernel,
        out_shape=jax.ShapeDtypeStruct((b, n), jnp.float32),
        grid_spec=pltpu.PrefetchScalarGridSpec(
            num_scalar_prefetch=0,
            grid=grid,
            in_specs=[
                # Constant index_map -> the (1, N) doublet row stays VMEM-resident.
                pl.BlockSpec((1, n), lambda i: (0, 0)),
                # Streamed batch tile, lane-dense full-N blocks.
                pl.BlockSpec((tb, n), lambda i: (i, 0)),
            ],
            out_specs=pl.BlockSpec((tb, n), lambda i: (i, 0)),
        ),
        compiler_params=pltpu.CompilerParams(
            # No cross-step state -> shard row tiles across TCs (v7x megacore).
            dimension_semantics=("parallel",),
            vmem_limit_bytes=vmem_limit,
        ),
    )(dbl, y)

    return out


def _reference(y, x_mesh, ka1=CUKA1, ka2=CUKA2, ka1_mult=KA1_MULT):
    """Pure-JAX transcription of LambdaConv.forward (torch semantics)."""
    y = jnp.asarray(y, jnp.float32)
    dint = _doublet_interp_row(y[0], x_mesh, ka1, ka2)
    return y * ka1_mult + dint[None, :] * (1.0 - ka1_mult)


if __name__ == "__main__":
    key = jax.random.PRNGKey(0)

    # Small shapes consistent with the module: a batch of diffraction profiles
    # sampled on an increasing 2-theta mesh (degrees).
    B, N = 2, 256
    x_mesh = jnp.linspace(10.0, 90.0, N, dtype=jnp.float32)
    y = jax.random.normal(key, (B, N), dtype=jnp.float32)

    out = jax.block_until_ready(lambda_conv_forward(y, x_mesh))
    ref = jax.block_until_ready(_reference(y, x_mesh))

    assert out.shape == y.shape, (out.shape, y.shape)
    assert jnp.allclose(out, ref, rtol=1e-5, atol=1e-5), (
        float(jnp.max(jnp.abs(out - ref)))
    )

    print("KERNEL_OK")
</pallas_src>

<mosaic_0001>
module attributes {stable_mosaic.version = 11 : i64} {
  func.func @_lambda_conv_kernel(%arg0: i32, %arg1: memref<1x256xf32, #tpu.memory_space<vmem>>, %arg2: memref<8x256xf32, #tpu.memory_space<vmem>>, %arg3: memref<8x256xf32, #tpu.memory_space<vmem>>) attributes {dimension_semantics = [#tpu.dimension_semantics<parallel>], iteration_bounds = array<i64: 1>, scalar_prefetch = 0 : i64, scratch_operands = 0 : i64, tpu.core_type = #tpu.core_type<tc>, window_params = [{pipeline_mode = #tpu.pipeline_mode<synchronous>, transform_indices = @transform_0, window_bounds = array<i64: 1, 256>}, {transform_indices = @transform_1, window_bounds = array<i64: 8, 256>}, {transform_indices = @transform_2, window_bounds = array<i64: 8, 256>}]} {
    %c0 = arith.constant 0 : index
    %c0_0 = arith.constant 0 : index
    %0 = vector.load %arg2[%c0, %c0_0] : memref<8x256xf32, #tpu.memory_space<vmem>>, vector<8x256xf32>
    %cst = arith.constant 0.577181578 : f32
    %1 = vector.broadcast %cst : f32 to vector<8x256xf32>
    %2 = arith.mulf %0, %1 : vector<8x256xf32>
    %c0_1 = arith.constant 0 : index
    %c0_2 = arith.constant 0 : index
    %3 = vector.load %arg1[%c0_1, %c0_2] : memref<1x256xf32, #tpu.memory_space<vmem>>, vector<1x256xf32>
    %4 = vector.broadcast %3 : vector<1x256xf32> to vector<8x256xf32>
    %5 = arith.addf %2, %4 : vector<8x256xf32>
    %c0_3 = arith.constant 0 : index
    %c0_4 = arith.constant 0 : index
    %6 = vector.load %arg3[%c0_3, %c0_4] : memref<8x256xf32, #tpu.memory_space<vmem>>, vector<8x256xf32>
    tpu.vector_store %arg3[%c0_3, %c0_4], %5 {strides = array<i32>} : memref<8x256xf32, #tpu.memory_space<vmem>>, vector<8x256xf32>,
    return
  }
  func.func @transform_0(%arg0: i32) -> (i32, i32) {
    %c0_i32 = arith.constant 0 : i32
    %c0_i32_0 = arith.constant 0 : i32
    %c0_i32_1 = arith.constant 0 : i32
    return %c0_i32, %c0_i32_0 : i32, i32
  }
  func.func @transform_1(%arg0: i32) -> (i32, i32) {
    %c0_i32 = arith.constant 0 : i32
    %c0_i32_0 = arith.constant 0 : i32
    return %arg0, %c0_i32 : i32, i32
  }
  func.func @transform_2(%arg0: i32) -> (i32, i32) {
    %c0_i32 = arith.constant 0 : i32
    %c0_i32_0 = arith.constant 0 : i32
    return %arg0, %c0_i32 : i32, i32
  }
}

</mosaic_0001>

<llo_original>
// kernel: tpu_custom_call.1
$region0: #{tpu_custom_call.1}
  #allocation0 [shape = 'u32[]', space=smem, size = 0x4, offset = 0x4, fixed_abs, tag = 'smem constant byte address 0x4 - core index']
  #allocation1 [shape = 'u32[72,128]{1,0:T(1,128)}', space=vmem, size = 0x9000, scoped, tag = 'internal scratch']
  %s0 = inlined_call_operand.hbm [shape: f32[1,256], index: 0, kind: input, shape index: {}]
  %s1 = inlined_call_operand.hbm [shape: f32[2,256], index: 1, kind: input, shape index: {}]
  %s2 = inlined_call_operand.hbm [shape: f32[2,256], index: 2, kind: output, shape index: {}]
  %s3 = sld [smem:[#allocation0]]
  $region26: #{tpu_custom_call.1} parent=0
    _
  %s5 = ssub.s32 1, %s3
  %s6 = scalar_select 0, %s5, %s3
  $region1: #{tpu_custom_call.1} parent=0
    #allocation2 [shape = 'u8[1024]{0}', space=vmem, size = 0x400, scoped, tag = 'input window, operand 0, single buffered']
    #allocation3 [shape = 's32[1]{0}', space=sflag, size = 0x4, scoped, tag = 'scoped memory for tpu_custom_call.1']
    #allocation4 [shape = 's32[1]{0}', space=sflag, size = 0x4, scoped, tag = 'scoped memory for tpu_custom_call.1']
    #allocation5 [shape = 'u8[8192]{0}', space=vmem, size = 0x2000, scoped, tag = 'input window, operand 1, single buffered']
    #allocation6 [shape = 's32[1]{0}', space=sflag, size = 0x4, scoped, tag = 'scoped memory for tpu_custom_call.1']
    #allocation7 [shape = 'u8[8192]{0}', space=vmem, size = 0x2000, scoped, tag = 'output window, operand 0, single buffered']
    %7 = vsyncpa [#allocation3], 0
    %8 = vsyncpa [#allocation6], 0
    %9 = vsyncpa [#allocation4], 0
    // Predicated region
    $region2: #{tpu_custom_call.1} parent=1 // pred_check
      _
    $region3: #{tpu_custom_call.1} parent=1 // pred_check_branch
      %11 = sbr.rel (0) target = $region5
    $region4: #{tpu_custom_call.1} parent=1 // pred_region
      %13 = vsyncadd [#allocation3], 0
      %s15 = sshll.u32 %s0, 4
      %s16 = int_to_ptr.hbm [resolvable:$true] %s15
      %s17 = sshll.u32 [#allocation2], 4
      %s18 = int_to_ptr.vmem [resolvable:$true] %s17
      %20 = dma.hbm_to_vmem [thread:$0]  %s16, 32, %s18, [#allocation3]
    $region5: #{tpu_custom_call.1} parent=1 // pred_fallthru
      _
    // Predicated region
    $region6: #{tpu_custom_call.1} parent=1 // pred_check
      _
    $region7: #{tpu_custom_call.1} parent=1 // pred_check_branch
      %22 = sbr.rel (0) target = $region9
    $region8: #{tpu_custom_call.1} parent=1 // pred_region
      %24 = vsyncadd [#allocation6], 192
      %s25 = sshll.u32 %s1, 4
      %s26 = int_to_ptr.hbm [resolvable:$true] %s25
      %s27 = sshll.u32 [#allocation5], 4
      %s28 = int_to_ptr.vmem [resolvable:$true] %s27
      %33 = dma.hbm_to_vmem [thread:$0]  %s26, 64, %s28, [#allocation6], 64, 64, 4
    $region9: #{tpu_custom_call.1} parent=1 // pred_fallthru
      _
    // Predicated region
    $region10: #{tpu_custom_call.1} parent=1 // pred_check
      _
    $region11: #{tpu_custom_call.1} parent=1 // pred_check_branch
      %35 = sbr.rel (0) target = $region13
    $region12: #{tpu_custom_call.1} parent=1 // pred_region
      %37 = dma.done [#allocation3], 32
    $region13: #{tpu_custom_call.1} parent=1 // pred_fallthru
      _
    // Predicated region
    $region14: #{tpu_custom_call.1} parent=1 // pred_check
      _
    $region15: #{tpu_custom_call.1} parent=1 // pred_check_branch
      %39 = sbr.rel (0) target = $region17
    $region16: #{tpu_custom_call.1} parent=1 // pred_region
      %41 = dma.done [#allocation6], 256
    $region17: #{tpu_custom_call.1} parent=1 // pred_fallthru
      _
    %v42 = vld [vmem:[#allocation5] sm:$0xf]
    %v43 = vld [vmem:[#allocation5 + $0x4] sm:$0xf]
    %v44 = vld [vmem:[#allocation5 + $0x8] sm:$0xf]
    %v45 = vld [vmem:[#allocation5 + $0xc] sm:$0xf]
    %v46 = vmul.f32 %v42, 0.5771816
    %v47 = vmul.f32 %v43, 0.5771816
    %v48 = vmul.f32 %v44, 0.5771816
    %v49 = vmul.f32 %v45, 0.5771816
    %v50 = vld [vmem:[#allocation2] sm:$0x3]
    %v52 = vperm.slane %v50, 0
    %v53 = vperm.slane %v50, 1
    %v54 = vrot.slane %v53, 6
    %vm55 = vcmask 1041408
    %v56 = vsel %vm55, %v52, %v54
    %vm57 = vcmask 1043458
    %v58 = vsel %vm57, %v52, %v54
    %v59 = vrot.slane %v58, 2
    %vm60 = vcmask 1045508
    %v61 = vsel %vm60, %v52, %v54
    %v62 = vrot.slane %v61, 4
    %vm63 = vcmask 1045504
    %v64 = vsel %vm63, %v54, %v52
    %v65 = vrot.slane %v64, 6
    %v70 = vadd.f32 %v46, %v56
    %v71 = vadd.f32 %v47, %v59
    %v72 = vadd.f32 %v48, %v62
    %v73 = vadd.f32 %v49, %v65
    %74 = vst [vmem:[#allocation7] sm:$0xf] %v70
    %75 = vst [vmem:[#allocation7 + $0x4] sm:$0xf] %v71
    %76 = vst [vmem:[#allocation7 + $0x8] sm:$0xf] %v72
    %77 = vst [vmem:[#allocation7 + $0xc] sm:$0xf] %v73
    // Predicated region
    $region18: #{tpu_custom_call.1} parent=1 // pred_check
      _
    $region19: #{tpu_custom_call.1} parent=1 // pred_check_branch
      %79 = sbr.rel (0) target = $region21
    $region20: #{tpu_custom_call.1} parent=1 // pred_region
      %81 = vsyncadd [#allocation4], 192
      %s82 = sshll.u32 [#allocation7], 4
      %s83 = int_to_ptr.vmem [resolvable:$true] %s82
      %s84 = sshll.u32 %s2, 4
      %s85 = int_to_ptr.hbm [resolvable:$true] %s84
      %90 = dma.vmem_to_hbm [thread:$0]  %s83, 64, %s85, [#allocation4], 64, 64, 4
    $region21: #{tpu_custom_call.1} parent=1 // pred_fallthru
      _
    // Predicated region
    $region22: #{tpu_custom_call.1} parent=1 // pred_check
      _
    $region23: #{tpu_custom_call.1} parent=1 // pred_check_branch
      %92 = sbr.rel (0) target = $region25
    $region24: #{tpu_custom_call.1} parent=1 // pred_region
      %94 = dma.done [#allocation4], 256
    $region25: #{tpu_custom_call.1} parent=1 // pred_fallthru
      _
    %95 = vsyncpa [#allocation3], 1
    %96 = vsyncpa [#allocation6], 1
    %97 = vsyncpa [#allocation4], 1

</llo_original>
